<compile_context>
chip_gen: v5e
topology: v5e:2x2
jax: 0.10.0
libtpu: 0.0.40
codegen_flags: <defaults>
</compile_context>

<pallas_src>
import functools

import jax
import jax.numpy as jnp
from jax.experimental import pallas as pl
from jax.experimental.pallas import tpu as pltpu


# ----------------------------------------------------------------------------
# Fused single-pass kernel: whole (TB*C, HWp) slab resident in VMEM per step.
# ----------------------------------------------------------------------------
def _se_fused_kernel(x_ref, w1b_ref, w2b_ref, o_ref, *, inv_hw):
    x = x_ref[...]                                                     # native dtype
    # Squeeze: per-(batch, channel) mean over the zero-padded spatial lanes.
    # Divide by the true H*W so zero padding does not bias the mean.
    mean = jnp.sum(x.astype(jnp.float32), axis=1, keepdims=True) * inv_hw  # (R, 1)
    # fc1 (1x1 conv, no bias) + ReLU.  Block-diagonal weight kron(I_TB, w1)
    # handles all TB folded batch elements in one MXU dot.
    h = jnp.dot(w1b_ref[...], mean, preferred_element_type=jnp.float32)    # (TB*Csq, 1)
    h = jnp.maximum(h, 0.0)
    # fc2 (1x1 conv, no bias) + sigmoid.
    s = jax.nn.sigmoid(jnp.dot(w2b_ref[...], h,
                               preferred_element_type=jnp.float32))        # (R, 1)
    # Excite: broadcast per-row scale over the lane axis; keep slab math in
    # the native dtype.
    o_ref[...] = (x * s.astype(x.dtype)).astype(o_ref.dtype)


# ----------------------------------------------------------------------------
# Two-pass tiled kernels (only used when one row-block would not fit VMEM).
# ----------------------------------------------------------------------------
def _rowsum_kernel(x_ref, sum_ref):
    # Accumulate per-row spatial sums across the HW-tile ("arbitrary") axis.
    @pl.when(pl.program_id(1) == 0)
    def _():
        sum_ref[...] = jnp.zeros_like(sum_ref)

    sum_ref[...] += jnp.sum(x_ref[...].astype(jnp.float32), axis=1, keepdims=True)


def _scale_kernel(x_ref, s_ref, o_ref):
    x = x_ref[...]
    o_ref[...] = (x * s_ref[...].astype(x.dtype)).astype(o_ref.dtype)


# ----------------------------------------------------------------------------
# Tiling helpers.
# ----------------------------------------------------------------------------
def _pick_tb(n, c, hwp, itemsize, max_bytes=4 << 20):
    """Batch-fold factor TB: divides N, TB*C % 8 == 0, block <= ~4 MiB."""
    valid = [tb for tb in range(1, n + 1) if n % tb == 0 and (tb * c) % 8 == 0]
    if not valid:
        # Single block spanning the full row dim (full-dim block is always legal).
        return n
    under = [tb for tb in valid if tb * c * hwp * itemsize <= max_bytes]
    if under:
        # Prefer keeping >= 2 grid steps (both v7x TensorCores busy) as long as
        # blocks stay >= 1 MiB; otherwise just take the largest block.
        multi = [tb for tb in under
                 if n // tb >= 2 and tb * c * hwp * itemsize >= (1 << 20)]
        return max(multi) if multi else max(under)
    return min(valid)


def _se_block_fused(x2, w1, w2, N, C, HW, HWp):
    itemsize = jnp.dtype(x2.dtype).itemsize
    TB = _pick_tb(N, C, HWp, itemsize)
    R = TB * C
    grid = (N // TB,)

    # Block-diagonal ("batch-folded") 1x1-conv weights: kron(I_TB, w).
    eye = jnp.eye(TB, dtype=jnp.float32)
    w1b = jnp.kron(eye, w1.astype(jnp.float32))   # (TB*Csq, TB*C)
    w2b = jnp.kron(eye, w2.astype(jnp.float32))   # (TB*C, TB*Csq)

    block_bytes = R * HWp * itemsize
    weight_bytes = (w1b.size + w2b.size) * 4
    # 2x double-buffered input + 2x double-buffered output + weights + margin.
    vmem_limit = int(max(4 * block_bytes + 2 * weight_bytes + (1 << 20),
                         32 * 1024 * 1024))

    return pl.pallas_call(
        functools.partial(_se_fused_kernel, inv_hw=1.0 / HW),
        out_shape=jax.ShapeDtypeStruct((N * C, HWp), x2.dtype),
        grid_spec=pltpu.PrefetchScalarGridSpec(
            num_scalar_prefetch=0,
            grid=grid,
            in_specs=[
                pl.BlockSpec((R, HWp), lambda i: (i, 0)),     # batch-folded slab
                pl.BlockSpec(w1b.shape, lambda i: (0, 0)),    # fc1 weight (full)
                pl.BlockSpec(w2b.shape, lambda i: (0, 0)),    # fc2 weight (full)
            ],
            out_specs=pl.BlockSpec((R, HWp), lambda i: (i, 0)),
        ),
        compiler_params=pltpu.CompilerParams(
            dimension_semantics=("parallel",),
            vmem_limit_bytes=vmem_limit,
        ),
    )(x2, w1b, w2b)


def _se_block_tiled(x2, w1, w2, N, C, HW, HWp, tile_bytes):
    """Two-pass path for slabs too large to keep a full row-block in VMEM."""
    NC = x2.shape[0]
    itemsize = jnp.dtype(x2.dtype).itemsize

    # Lane tile: divisor of HWp, multiple of 128 (HWp is always one).
    thw_choices = [d for d in range(128, HWp + 1, 128) if HWp % d == 0]
    fit = [d for d in thw_choices if 8 * d * itemsize <= tile_bytes]
    THW = max(fit) if fit else min(thw_choices)

    # Row tile: divisor of N*C, multiple of 8 (else fall back to full dim).
    rb_choices = [d for d in range(8, NC + 1, 8) if NC % d == 0]
    if rb_choices:
        fit = [d for d in rb_choices if d * THW * itemsize <= tile_bytes]
        RB = max(fit) if fit else min(rb_choices)
    else:
        RB = NC

    grid = (NC // RB, HWp // THW)
    vmem_limit = int(max(6 * RB * THW * itemsize + (1 << 20), 32 * 1024 * 1024))

    # Pass 1: per-row spatial sums (reduction over the HW-tile grid axis; the
    # (RB, 1) output block stays VMEM-resident across the "arbitrary" axis).
    sums = pl.pallas_call(
        _rowsum_kernel,
        out_shape=jax.ShapeDtypeStruct((NC, 1), jnp.float32),
        grid_spec=pltpu.PrefetchScalarGridSpec(
            num_scalar_prefetch=0,
            grid=grid,
            in_specs=[pl.BlockSpec((RB, THW), lambda i, k: (i, k))],
            out_specs=pl.BlockSpec((RB, 1), lambda i, k: (i, 0)),
        ),
        compiler_params=pltpu.CompilerParams(
            dimension_semantics=("parallel", "arbitrary"),
            vmem_limit_bytes=vmem_limit,
        ),
    )(x2)

    # Tiny per-(N, C) fc1/relu/fc2/sigmoid in plain JAX (negligible work, no
    # value in a Pallas kernel for a few-hundred-element tensor).
    mean = (sums * (1.0 / HW)).reshape(N, C)
    h = jnp.maximum(mean @ w1.astype(jnp.float32).T, 0.0)      # (N, Csq)
    scales = jax.nn.sigmoid(h @ w2.astype(jnp.float32).T)      # (N, C)
    scales = scales.reshape(NC, 1)

    # Pass 2: excite.  (A second streaming read of x is unavoidable once a
    # row-block no longer fits VMEM.)
    return pl.pallas_call(
        _scale_kernel,
        out_shape=jax.ShapeDtypeStruct((NC, HWp), x2.dtype),
        grid_spec=pltpu.PrefetchScalarGridSpec(
            num_scalar_prefetch=0,
            grid=grid,
            in_specs=[pl.BlockSpec((RB, THW), lambda i, k: (i, k)),
                      pl.BlockSpec((RB, 1), lambda i, k: (i, 0))],
            out_specs=pl.BlockSpec((RB, THW), lambda i, k: (i, k)),
        ),
        compiler_params=pltpu.CompilerParams(
            dimension_semantics=("parallel", "parallel"),
            vmem_limit_bytes=vmem_limit,
        ),
    )(x2, scales)


# ----------------------------------------------------------------------------
# Public wrapper (matches PyTorch SEBlock.forward).
# ----------------------------------------------------------------------------
def se_block(x, w1, w2, *, force_tiled=False, tile_bytes=2 << 20):
    """x: (N, C, H, W); w1: (Csq, C); w2: (C, Csq)."""
    N, C, H, W = x.shape
    HW = H * W
    HWp = ((HW + 127) // 128) * 128           # lane-dense spatial axis
    itemsize = jnp.dtype(x.dtype).itemsize

    x2 = x.reshape(N * C, HW)
    if HWp != HW:
        x2 = jnp.pad(x2, ((0, 0), (0, HWp - HW)))

    # If even a single batch element's (C, HWp) row-block is too big to keep
    # resident (incl. v7x's 64 MiB VMEM), switch to the two-pass tiled path.
    if force_tiled or C * HWp * itemsize > (8 << 20):
        out2 = _se_block_tiled(x2, w1, w2, N, C, HW, HWp, tile_bytes)
    else:
        out2 = _se_block_fused(x2, w1, w2, N, C, HW, HWp)

    if HWp != HW:
        out2 = out2[:, :HW]
    return out2.reshape(N, C, H, W)


def se_block_reference(x, w1, w2):
    # Pure-JAX reference matching the PyTorch SEBlock forward.
    scale = jnp.mean(x, axis=(2, 3), keepdims=True)           # adaptive_avg_pool2d(x, 1)
    scale = jnp.einsum('oc,nchw->nohw', w1, scale)            # fc1 (1x1 conv, no bias)
    scale = jax.nn.relu(scale)
    scale = jnp.einsum('oc,nchw->nohw', w2, scale)            # fc2 (1x1 conv, no bias)
    scale = jax.nn.sigmoid(scale)
    return x * scale


if __name__ == "__main__":
    # Module config: channels=4, reduction=4 -> squeezed_channels = max(1, 4//4) = 1
    N, C, H, W = 2, 4, 16, 16
    reduction = 4
    Csq = max(1, C // reduction)

    key = jax.random.PRNGKey(0)
    kx, k1, k2, k3, k4, k5 = jax.random.split(key, 6)

    x = jax.random.normal(kx, (N, C, H, W), dtype=jnp.float32)
    # Conv2d weight (out, in, 1, 1) collapsed to (out, in); uniform init.
    bound1 = 1.0 / (C ** 0.5)
    bound2 = 1.0 / (Csq ** 0.5)
    w1 = jax.random.uniform(k1, (Csq, C), jnp.float32, -bound1, bound1)
    w2 = jax.random.uniform(k2, (C, Csq), jnp.float32, -bound2, bound2)

    # 1) Fused single-pass path.
    out = jax.block_until_ready(se_block(x, w1, w2))
    ref = se_block_reference(x, w1, w2)
    assert out.shape == (N, C, H, W)
    assert jnp.allclose(out, ref, atol=1e-5, rtol=1e-5), "mismatch (fused path)"

    # 2) Lane-padding path (H*W = 49 -> padded to 128 lanes).
    x7 = jax.random.normal(k3, (N, C, 7, 7), dtype=jnp.float32)
    out7 = jax.block_until_ready(se_block(x7, w1, w2))
    ref7 = se_block_reference(x7, w1, w2)
    assert jnp.allclose(out7, ref7, atol=1e-5, rtol=1e-5), "mismatch (padded HW)"

    # 3) Two-pass tiled path (forced with tiny tiles so the HW-tile reduction
    #    axis actually has multiple steps).
    C2 = 16
    Csq2 = max(1, C2 // reduction)
    xt = jax.random.normal(k4, (2, C2, 32, 32), dtype=jnp.float32)
    b1 = 1.0 / (C2 ** 0.5)
    b2 = 1.0 / (Csq2 ** 0.5)
    w1t = jax.random.uniform(k5, (Csq2, C2), jnp.float32, -b1, b1)
    w2t = jax.random.uniform(k2, (C2, Csq2), jnp.float32, -b2, b2)
    outt = jax.block_until_ready(
        se_block(xt, w1t, w2t, force_tiled=True, tile_bytes=16 * 1024))
    reft = se_block_reference(xt, w1t, w2t)
    assert jnp.allclose(outt, reft, atol=1e-5, rtol=1e-5), "mismatch (tiled path)"

    print("KERNEL_OK")
</pallas_src>

<mosaic_0001>
module attributes {stable_mosaic.version = 11 : i64} {
  func.func @_se_fused_kernel(%arg0: i32, %arg1: memref<8x256xf32, #tpu.memory_space<vmem>>, %arg2: memref<2x8xf32, #tpu.memory_space<vmem>>, %arg3: memref<8x2xf32, #tpu.memory_space<vmem>>, %arg4: memref<8x256xf32, #tpu.memory_space<vmem>>) attributes {dimension_semantics = [#tpu.dimension_semantics<parallel>], iteration_bounds = array<i64: 1>, scalar_prefetch = 0 : i64, scratch_operands = 0 : i64, tpu.core_type = #tpu.core_type<tc>, window_params = [{transform_indices = @transform_0, window_bounds = array<i64: 8, 256>}, {pipeline_mode = #tpu.pipeline_mode<synchronous>, transform_indices = @transform_1, window_bounds = array<i64: 2, 8>}, {pipeline_mode = #tpu.pipeline_mode<synchronous>, transform_indices = @transform_2, window_bounds = array<i64: 8, 2>}, {transform_indices = @transform_3, window_bounds = array<i64: 8, 256>}]} {
    %c0 = arith.constant 0 : index
    %c0_0 = arith.constant 0 : index
    %0 = vector.load %arg1[%c0, %c0_0] : memref<8x256xf32, #tpu.memory_space<vmem>>, vector<8x256xf32>
    %cst = arith.constant dense<0.000000e+00> : vector<8xf32>
    %1 = vector.multi_reduction <add>, %0, %cst [1] : vector<8x256xf32> to vector<8xf32>
    %2 = vector.shape_cast %1 : vector<8xf32> to vector<8x1xf32>
    %cst_1 = arith.constant 3.906250e-03 : f32
    %3 = vector.broadcast %cst_1 : f32 to vector<8x1xf32>
    %4 = arith.mulf %2, %3 : vector<8x1xf32>
    %c0_2 = arith.constant 0 : index
    %c0_3 = arith.constant 0 : index
    %5 = vector.load %arg2[%c0_2, %c0_3] : memref<2x8xf32, #tpu.memory_space<vmem>>, vector<2x8xf32>
    %cst_4 = arith.constant dense<0.000000e+00> : vector<2x1xf32>
    %6 = tpu.matmul %5, %4, %cst_4 {dimension_numbers = #tpu.dot_dimension_numbers<[1], [0], [0], [1], [0, 0, 1, 1], [], []>} : vector<2x8xf32>, vector<8x1xf32>, vector<2x1xf32> -> vector<2x1xf32>
    %cst_5 = arith.constant 0.000000e+00 : f32
    %7 = vector.broadcast %cst_5 : f32 to vector<2x1xf32>
    %8 = arith.maximumf %6, %7 : vector<2x1xf32>
    %c0_6 = arith.constant 0 : index
    %c0_7 = arith.constant 0 : index
    %9 = vector.load %arg3[%c0_6, %c0_7] : memref<8x2xf32, #tpu.memory_space<vmem>>, vector<8x2xf32>
    %cst_8 = arith.constant dense<0.000000e+00> : vector<8x1xf32>
    %10 = tpu.matmul %9, %8, %cst_8 {dimension_numbers = #tpu.dot_dimension_numbers<[1], [0], [0], [1], [0, 0, 1, 1], [], []>} : vector<8x2xf32>, vector<2x1xf32>, vector<8x1xf32> -> vector<8x1xf32>
    %11 = arith.negf %10 : vector<8x1xf32>
    %12 = math.exp %11 : vector<8x1xf32>
    %cst_9 = arith.constant 1.000000e+00 : f32
    %13 = vector.broadcast %cst_9 : f32 to vector<8x1xf32>
    %14 = arith.addf %13, %12 : vector<8x1xf32>
    %15 = arith.divf %13, %14 : vector<8x1xf32>
    %16 = vector.broadcast %15 : vector<8x1xf32> to vector<8x256xf32>
    %17 = arith.mulf %0, %16 : vector<8x256xf32>
    %c0_10 = arith.constant 0 : index
    %c0_11 = arith.constant 0 : index
    %18 = vector.load %arg4[%c0_10, %c0_11] : memref<8x256xf32, #tpu.memory_space<vmem>>, vector<8x256xf32>
    tpu.vector_store %arg4[%c0_10, %c0_11], %17 {strides = array<i32>} : memref<8x256xf32, #tpu.memory_space<vmem>>, vector<8x256xf32>,
    return
  }
  func.func @transform_0(%arg0: i32) -> (i32, i32) {
    %c0_i32 = arith.constant 0 : i32
    %c0_i32_0 = arith.constant 0 : i32
    return %arg0, %c0_i32 : i32, i32
  }
  func.func @transform_1(%arg0: i32) -> (i32, i32) {
    %c0_i32 = arith.constant 0 : i32
    %c0_i32_0 = arith.constant 0 : i32
    %c0_i32_1 = arith.constant 0 : i32
    return %c0_i32, %c0_i32_0 : i32, i32
  }
  func.func @transform_2(%arg0: i32) -> (i32, i32) {
    %c0_i32 = arith.constant 0 : i32
    %c0_i32_0 = arith.constant 0 : i32
    %c0_i32_1 = arith.constant 0 : i32
    return %c0_i32, %c0_i32_0 : i32, i32
  }
  func.func @transform_3(%arg0: i32) -> (i32, i32) {
    %c0_i32 = arith.constant 0 : i32
    %c0_i32_0 = arith.constant 0 : i32
    return %arg0, %c0_i32 : i32, i32
  }
}

</mosaic_0001>

<llo_original>
// kernel: tpu_custom_call.1
$region0: #{tpu_custom_call.1}
  #allocation0 [shape = 'u32[]', space=smem, size = 0x4, offset = 0x4, fixed_abs, tag = 'smem constant byte address 0x4 - core index']
  #allocation1 [shape = 'u32[72,128]{1,0:T(1,128)}', space=vmem, size = 0x9000, scoped, tag = 'internal scratch']
  %s0 = inlined_call_operand.hbm [shape: f32[8,256], index: 0, kind: input, shape index: {}]
  %s1 = inlined_call_operand.vmem [shape: f32[2,8], index: 1, kind: input, shape index: {}]
  %s2 = inlined_call_operand.vmem [shape: f32[8,2], index: 2, kind: input, shape index: {}]
  %s3 = inlined_call_operand.hbm [shape: f32[8,256], index: 3, kind: output, shape index: {}]
  %s4 = sld [smem:[#allocation0]]
  $region26: #{tpu_custom_call.1} parent=0
    _
  %s6 = ssub.s32 1, %s4
  %s7 = scalar_select 0, %s6, %s4
  $region1: #{tpu_custom_call.1} parent=0
    #allocation2 [shape = 'u8[8192]{0}', space=vmem, size = 0x2000, scoped, tag = 'input window, operand 0, single buffered']
    #allocation3 [shape = 's32[1]{0}', space=sflag, size = 0x4, scoped, tag = 'scoped memory for tpu_custom_call.1']
    #allocation4 [shape = 's32[1]{0}', space=sflag, size = 0x4, scoped, tag = 'scoped memory for tpu_custom_call.1']
    #allocation5 [shape = 'u8[8192]{0}', space=vmem, size = 0x2000, scoped, tag = 'output window, operand 0, single buffered']
    %8 = vsyncpa [#allocation3], 0
    %9 = vsyncpa [#allocation4], 0
    // Predicated region
    $region2: #{tpu_custom_call.1} parent=1 // pred_check
      _
    $region3: #{tpu_custom_call.1} parent=1 // pred_check_branch
      %11 = sbr.rel (0) target = $region5
    $region4: #{tpu_custom_call.1} parent=1 // pred_region
      %13 = vsyncadd [#allocation3], 0
      %s15 = sshll.u32 %s0, 4
      %s16 = int_to_ptr.hbm [resolvable:$true] %s15
      %s17 = sshll.u32 [#allocation2], 4
      %s18 = int_to_ptr.vmem [resolvable:$true] %s17
      %20 = dma.hbm_to_vmem [thread:$0]  %s16, 256, %s18, [#allocation3]
    $region5: #{tpu_custom_call.1} parent=1 // pred_fallthru
      _
    // Predicated region
    $region6: #{tpu_custom_call.1} parent=1 // pred_check
      _
    $region7: #{tpu_custom_call.1} parent=1 // pred_check_branch
      %22 = sbr.rel (0) target = $region9
    $region8: #{tpu_custom_call.1} parent=1 // pred_region
      _
    $region9: #{tpu_custom_call.1} parent=1 // pred_fallthru
      _
    // Predicated region
    $region10: #{tpu_custom_call.1} parent=1 // pred_check
      _
    $region11: #{tpu_custom_call.1} parent=1 // pred_check_branch
      %24 = sbr.rel (0) target = $region13
    $region12: #{tpu_custom_call.1} parent=1 // pred_region
      _
    $region13: #{tpu_custom_call.1} parent=1 // pred_fallthru
      _
    // Predicated region
    $region14: #{tpu_custom_call.1} parent=1 // pred_check
      _
    $region15: #{tpu_custom_call.1} parent=1 // pred_check_branch
      %26 = sbr.rel (0) target = $region17
    $region16: #{tpu_custom_call.1} parent=1 // pred_region
      %28 = dma.done [#allocation3], 256
    $region17: #{tpu_custom_call.1} parent=1 // pred_fallthru
      _
    %v29 = vld [vmem:[#allocation2] sm:$0xff]
    %v30 = vld [vmem:[#allocation2 + $0x8] sm:$0xff]
    %v31 = vadd.f32 %v29, %v30
    %32 = vadd.xlane.f32.xlu0 %v31
    %v33 = vpop.xlane.xlu0 %32
    %v34 = vmul.f32 %v33, 0.00390625
    %v35 = vld [vmem:[%s1] sm:$0x3]
    %vm36 = vcmask 64512
    %v38 = vsel %vm36, %v35, 0
    %40 = vmatpush.msra.mxu0 0.0
    %41 = vmatpush.msra.mxu0 0.0
    %42 = vmatpush.msra.mxu0 0.0
    %43 = vmatpush.msra.mxu0 0.0
    %44 = vmatpush.msra.mxu0 0.0
    %45 = vmatpush.msra.mxu0 0.0
    %46 = vmatpush.msra.mxu0 0.0
    %47 = vmatpush.msra.mxu0 0.0
    %48 = vmatpush.msra.mxu0 0.0
    %49 = vmatpush.msra.mxu0 0.0
    %50 = vmatpush.msra.mxu0 0.0
    %51 = vmatpush.msra.mxu0 0.0
    %52 = vmatpush.msra.mxu0 0.0
    %53 = vmatpush.msra.mxu0 0.0
    %54 = vmatpush.msra.mxu0 0.0
    %55 = vmatpush.msra.mxu0 %v34
    %56 = vmatmul.f32.gmra.mxu0 %v38
    %v57 = vpop.f32.mrf.mxu0
    %v58 = vadd.f32 0.0, %v57
    %59 = vdwg.mxu0
    %v60 = vmax.f32 %v58, 0.0
    %v61 = vld [vmem:[%s2] sm:$0xff]
    %vm62 = vcmask 15360
    %v64 = vsel %vm62, %v61, 0
    %vm66 = vcmask 1041408
    %v68 = vsel %vm66, %v60, 0
    %70 = vmatpush.msra.mxu0 0.0
    %71 = vmatpush.msra.mxu0 0.0
    %72 = vmatpush.msra.mxu0 0.0
    %73 = vmatpush.msra.mxu0 0.0
    %74 = vmatpush.msra.mxu0 0.0
    %75 = vmatpush.msra.mxu0 0.0
    %76 = vmatpush.msra.mxu0 0.0
    %77 = vmatpush.msra.mxu0 0.0
    %78 = vmatpush.msra.mxu0 0.0
    %79 = vmatpush.msra.mxu0 0.0
    %80 = vmatpush.msra.mxu0 0.0
    %81 = vmatpush.msra.mxu0 0.0
    %82 = vmatpush.msra.mxu0 0.0
    %83 = vmatpush.msra.mxu0 0.0
    %84 = vmatpush.msra.mxu0 0.0
    %85 = vmatpush.msra.mxu0 %v68
    %86 = vmatmul.f32.gmra.mxu0 %v64
    %v87 = vpop.f32.mrf.mxu0
    %v88 = vadd.f32 0.0, %v87
    %89 = vdwg.mxu0
    %v90 = vxor.u32 %v88, 2147483648
    %v91 = vmul.f32 %v90, 1.442695
    %v92 = vpow.pop %v91
    %v93 = vadd.f32 %v92, 1.0
    %v94 = vrcp.pop %v93
    %v95 = vmul.f32 %v93, %v94
    %v96 = vsub.f32 1.0, %v95
    %v97 = vmul.f32 %v94, %v96
    %v98 = vadd.f32 %v94, %v97
    %vm99 = vweird.f32 %v93
    %vm100 = vweird.f32 %v94
    %vm101 = vmor %vm99, %vm100
    %v102 = vsel %vm101, %v94, %v98
    %v103 = vand.u32 2147483647, %v93
    %vm104 = vcmp.eq.f32.partialorder %v103, 8.507059e+37
    %v105 = vand.u32 %v93, 2147483648
    %v106 = vor.u32 1.1754944e-38, %v105
    %v107 = vsel %vm104, %v106, %v102
    %v108 = vmul.f32 1.0, %v107
    %110 = vset.pattern.permute.xlu0 0
    %111 = vperm.xlu0 %110, %v108
    %v112 = vpop.permute.xlu0 %111
    %v114 = vmul.f32 %v29, %v112
    %v115 = vmul.f32 %v30, %v112
    %116 = vst [vmem:[#allocation5] sm:$0xff] %v114
    %117 = vst [vmem:[#allocation5 + $0x8] sm:$0xff] %v115
    // Predicated region
    $region18: #{tpu_custom_call.1} parent=1 // pred_check
      _
    $region19: #{tpu_custom_call.1} parent=1 // pred_check_branch
      %119 = sbr.rel (0) target = $region21
    $region20: #{tpu_custom_call.1} parent=1 // pred_region
      %121 = vsyncadd [#allocation4], 0
      %s123 = sshll.u32 [#allocation5], 4
      %s124 = int_to_ptr.vmem [resolvable:$true] %s123
      %s125 = sshll.u32 %s3, 4
      %s126 = int_to_ptr.hbm [resolvable:$true] %s125
      %128 = dma.vmem_to_hbm [thread:$0]  %s124, 256, %s126, [#allocation4]
    $region21: #{tpu_custom_call.1} parent=1 // pred_fallthru
      _
    // Predicated region
    $region22: #{tpu_custom_call.1} parent=1 // pred_check
      _
    $region23: #{tpu_custom_call.1} parent=1 // pred_check_branch
      %130 = sbr.rel (0) target = $region25
    $region24: #{tpu_custom_call.1} parent=1 // pred_region
      %132 = dma.done [#allocation4], 256
    $region25: #{tpu_custom_call.1} parent=1 // pred_fallthru
      _
    %133 = vsyncpa [#allocation3], 1
    %134 = vsyncpa [#allocation4], 1

</llo_original>
